<compile_context>
chip_gen: v7x
topology: tpu7x:2x2x1
jax: 0.10.0
libtpu: 0.0.40
codegen_flags: <defaults>
</compile_context>

<pallas_src>
import functools

import jax
import jax.numpy as jnp
from jax.experimental import pallas as pl
from jax.experimental.pallas import tpu as pltpu

EPS = 1e-5


def adain1d_kernel(gamma_ref, beta_ref, x_ref, o_ref, *, inv_t):
    # gamma_ref: (1, TC, 1)   precomputed fc(s)[:, :C] slice for this tile
    # beta_ref : (1, TC, 1)   precomputed fc(s)[:, C:] slice for this tile
    # x_ref    : (1, TC, Tp)  input tile (zero-padded along T)
    # o_ref    : (1, TC, Tp)  output tile
    x = x_ref[...].astype(jnp.float32)                       # (1, TC, Tp)

    # Single-pass moments (zero padding adds nothing; denominator is true T).
    s1 = jnp.sum(x, axis=2, keepdims=True)                   # (1, TC, 1)
    s2 = jnp.sum(x * x, axis=2, keepdims=True)                # (1, TC, 1)
    mean = s1 * inv_t
    var = jnp.maximum(s2 * inv_t - mean * mean, 0.0)
    inv = jax.lax.rsqrt(var + EPS)

    # Fused affine: out = x * scale + shift
    scale = (1.0 + gamma_ref[...].astype(jnp.float32)) * inv  # (1, TC, 1)
    shift = beta_ref[...].astype(jnp.float32) - scale * mean  # (1, TC, 1)
    o_ref[...] = (x * scale + shift).astype(o_ref.dtype)


def adain1d(x, s, fc_weight, fc_bias, *, target_tile_bytes=4 * 1024 * 1024):
    """x: (B, C, T), s: (B, S), fc_weight: (2C, S), fc_bias: (2C,)."""
    B, C, T = x.shape
    S = s.shape[1]
    assert fc_weight.shape == (2 * C, S)
    assert fc_bias.shape == (2 * C,)

    # --- fc(s) hoisted out of the kernel: one (B,S)@(S,2C) matmul in XLA ---
    h = (s.astype(jnp.float32) @ fc_weight.astype(jnp.float32).T
         + fc_bias.astype(jnp.float32))                       # (B, 2C)
    gamma = h[:, :C][:, :, None]                              # (B, C, 1)
    beta = h[:, C:][:, :, None]                               # (B, C, 1)

    # --- lane/sublane-friendly padding & channel tiling ---
    T_pad = ((T + 127) // 128) * 128                          # lane-dense stores
    itemsize = jnp.dtype(x.dtype).itemsize
    # Channel tile: aim for ~target_tile_bytes per (1, TC, T_pad) tile,
    # multiple of 8 (sublane), clamped to the (padded) channel count.
    tc = max(8, (target_tile_bytes // (T_pad * itemsize)) // 8 * 8)
    c_pad8 = ((C + 7) // 8) * 8
    tc = int(min(tc, c_pad8))
    C_pad = ((C + tc - 1) // tc) * tc

    xp = x
    if (C_pad, T_pad) != (C, T):
        xp = jnp.pad(x, ((0, 0), (0, C_pad - C), (0, T_pad - T)))
    if C_pad != C:
        gamma = jnp.pad(gamma, ((0, 0), (0, C_pad - C), (0, 0)))
        beta = jnp.pad(beta, ((0, 0), (0, C_pad - C), (0, 0)))

    grid = (B, C_pad // tc)

    tile_bytes = tc * T_pad * itemsize
    # Enough for double-buffered in+out tiles plus headroom; raise beyond the
    # v5e 16 MiB default when needed, stay well under v7x's 64 MiB physical.
    vmem_limit = int(min(48 * 1024 * 1024,
                         max(16 * 1024 * 1024, 6 * tile_bytes)))

    cost = pl.CostEstimate(
        flops=int(5 * B * C_pad * T_pad),
        transcendentals=int(B * C_pad),
        bytes_accessed=int(2 * B * C_pad * T_pad * itemsize
                           + 2 * B * C_pad * 4),
    )

    out = pl.pallas_call(
        functools.partial(adain1d_kernel, inv_t=1.0 / T),
        out_shape=jax.ShapeDtypeStruct((B, C_pad, T_pad), x.dtype),
        grid_spec=pl.GridSpec(
            grid=grid,
            in_specs=[
                pl.BlockSpec((1, tc, 1), lambda b, c: (b, c, 0)),      # gamma
                pl.BlockSpec((1, tc, 1), lambda b, c: (b, c, 0)),      # beta
                pl.BlockSpec((1, tc, T_pad), lambda b, c: (b, c, 0)),  # x
            ],
            out_specs=pl.BlockSpec((1, tc, T_pad), lambda b, c: (b, c, 0)),
        ),
        compiler_params=pltpu.CompilerParams(
            dimension_semantics=("parallel", "parallel"),
            vmem_limit_bytes=vmem_limit,
        ),
        cost_estimate=cost,
    )(gamma, beta, xp)

    if (C_pad, T_pad) != (C, T):
        out = out[:, :C, :T]
    return out


def adain1d_ref(x, s, fc_weight, fc_bias):
    """Pure-JAX reference matching PyTorch AdaIN1d semantics."""
    B, C, T = x.shape
    h = s @ fc_weight.T + fc_bias                      # (B, 2C)
    gamma = h[:, :C][:, :, None]                       # (B, C, 1)
    beta = h[:, C:][:, :, None]                        # (B, C, 1)
    mean = jnp.mean(x, axis=2, keepdims=True)
    var = jnp.mean((x - mean) ** 2, axis=2, keepdims=True)
    x_norm = (x - mean) / jnp.sqrt(var + EPS)
    return (1.0 + gamma) * x_norm + beta


if __name__ == "__main__":
    B, C, T, S = 2, 8, 32, 16  # batch, num_features, time, style_dim

    key = jax.random.PRNGKey(0)
    kx, ks, kw, kb = jax.random.split(key, 4)

    x = jax.random.normal(kx, (B, C, T), dtype=jnp.float32)
    s = jax.random.normal(ks, (B, S), dtype=jnp.float32)

    # Deterministic nn.Linear(style_dim, 2*num_features) init: U(-1/sqrt(S), 1/sqrt(S))
    bound = 1.0 / (S ** 0.5)
    fc_weight = jax.random.uniform(kw, (2 * C, S), jnp.float32, -bound, bound)
    fc_bias = jax.random.uniform(kb, (2 * C,), jnp.float32, -bound, bound)

    out = adain1d(x, s, fc_weight, fc_bias)
    out = jax.block_until_ready(out)

    ref = adain1d_ref(x, s, fc_weight, fc_bias)
    assert out.shape == (B, C, T)
    assert jnp.allclose(out, ref, atol=1e-4, rtol=1e-4), \
        f"max err {jnp.max(jnp.abs(out - ref))}"

    print("KERNEL_OK")
</pallas_src>

<mosaic_0001>
module attributes {stable_mosaic.version = 11 : i64} {
  func.func @adain1d_kernel(%arg0: i32, %arg1: i32, %arg2: memref<1x8x1xf32, #tpu.memory_space<vmem>>, %arg3: memref<1x8x1xf32, #tpu.memory_space<vmem>>, %arg4: memref<1x8x128xf32, #tpu.memory_space<vmem>>, %arg5: memref<1x8x128xf32, #tpu.memory_space<vmem>>) attributes {dimension_semantics = [#tpu.dimension_semantics<parallel>, #tpu.dimension_semantics<parallel>], iteration_bounds = array<i64: 2, 1>, scalar_prefetch = 0 : i64, scratch_operands = 0 : i64, tpu.core_type = #tpu.core_type<tc>, window_params = [{transform_indices = @transform_0, window_bounds = array<i64: 1, 8, 1>}, {transform_indices = @transform_1, window_bounds = array<i64: 1, 8, 1>}, {transform_indices = @transform_2, window_bounds = array<i64: 1, 8, 128>}, {transform_indices = @transform_3, window_bounds = array<i64: 1, 8, 128>}]} {
    %c0 = arith.constant 0 : index
    %c0_0 = arith.constant 0 : index
    %c0_1 = arith.constant 0 : index
    %0 = vector.load %arg4[%c0, %c0_0, %c0_1] : memref<1x8x128xf32, #tpu.memory_space<vmem>>, vector<1x8x128xf32>
    %cst = arith.constant dense<0.000000e+00> : vector<1x8xf32>
    %1 = vector.multi_reduction <add>, %0, %cst [2] : vector<1x8x128xf32> to vector<1x8xf32>
    %2 = vector.shape_cast %1 : vector<1x8xf32> to vector<1x8x1xf32>
    %3 = arith.mulf %0, %0 : vector<1x8x128xf32>
    %cst_2 = arith.constant dense<0.000000e+00> : vector<1x8xf32>
    %4 = vector.multi_reduction <add>, %3, %cst_2 [2] : vector<1x8x128xf32> to vector<1x8xf32>
    %5 = vector.shape_cast %4 : vector<1x8xf32> to vector<1x8x1xf32>
    %cst_3 = arith.constant 3.125000e-02 : f32
    %6 = vector.broadcast %cst_3 : f32 to vector<1x8x1xf32>
    %7 = arith.mulf %2, %6 : vector<1x8x1xf32>
    %cst_4 = arith.constant 3.125000e-02 : f32
    %8 = vector.broadcast %cst_4 : f32 to vector<1x8x1xf32>
    %9 = arith.mulf %5, %8 : vector<1x8x1xf32>
    %10 = arith.mulf %7, %7 : vector<1x8x1xf32>
    %11 = arith.subf %9, %10 : vector<1x8x1xf32>
    %cst_5 = arith.constant 0.000000e+00 : f32
    %12 = vector.broadcast %cst_5 : f32 to vector<1x8x1xf32>
    %13 = arith.maximumf %11, %12 : vector<1x8x1xf32>
    %cst_6 = arith.constant 9.99999974E-6 : f32
    %14 = vector.broadcast %cst_6 : f32 to vector<1x8x1xf32>
    %15 = arith.addf %13, %14 : vector<1x8x1xf32>
    %16 = math.rsqrt %15 : vector<1x8x1xf32>
    %c0_7 = arith.constant 0 : index
    %c0_8 = arith.constant 0 : index
    %c0_9 = arith.constant 0 : index
    %17 = vector.load %arg2[%c0_7, %c0_8, %c0_9] : memref<1x8x1xf32, #tpu.memory_space<vmem>>, vector<1x8x1xf32>
    %cst_10 = arith.constant 1.000000e+00 : f32
    %18 = vector.broadcast %cst_10 : f32 to vector<1x8x1xf32>
    %19 = arith.addf %18, %17 : vector<1x8x1xf32>
    %20 = arith.mulf %19, %16 : vector<1x8x1xf32>
    %c0_11 = arith.constant 0 : index
    %c0_12 = arith.constant 0 : index
    %c0_13 = arith.constant 0 : index
    %21 = vector.load %arg3[%c0_11, %c0_12, %c0_13] : memref<1x8x1xf32, #tpu.memory_space<vmem>>, vector<1x8x1xf32>
    %22 = arith.mulf %20, %7 : vector<1x8x1xf32>
    %23 = arith.subf %21, %22 : vector<1x8x1xf32>
    %24 = vector.broadcast %20 : vector<1x8x1xf32> to vector<1x8x128xf32>
    %25 = arith.mulf %0, %24 : vector<1x8x128xf32>
    %26 = vector.broadcast %23 : vector<1x8x1xf32> to vector<1x8x128xf32>
    %27 = arith.addf %25, %26 : vector<1x8x128xf32>
    %c0_14 = arith.constant 0 : index
    %c0_15 = arith.constant 0 : index
    %c0_16 = arith.constant 0 : index
    %28 = vector.load %arg5[%c0_14, %c0_15, %c0_16] : memref<1x8x128xf32, #tpu.memory_space<vmem>>, vector<1x8x128xf32>
    tpu.vector_store %arg5[%c0_14, %c0_15, %c0_16], %27 {strides = array<i32>} : memref<1x8x128xf32, #tpu.memory_space<vmem>>, vector<1x8x128xf32>,
    return
  }
  func.func @transform_0(%arg0: i32, %arg1: i32) -> (i32, i32, i32) {
    %c0_i32 = arith.constant 0 : i32
    %c0_i32_0 = arith.constant 0 : i32
    return %arg0, %arg1, %c0_i32 : i32, i32, i32
  }
  func.func @transform_1(%arg0: i32, %arg1: i32) -> (i32, i32, i32) {
    %c0_i32 = arith.constant 0 : i32
    %c0_i32_0 = arith.constant 0 : i32
    return %arg0, %arg1, %c0_i32 : i32, i32, i32
  }
  func.func @transform_2(%arg0: i32, %arg1: i32) -> (i32, i32, i32) {
    %c0_i32 = arith.constant 0 : i32
    %c0_i32_0 = arith.constant 0 : i32
    return %arg0, %arg1, %c0_i32 : i32, i32, i32
  }
  func.func @transform_3(%arg0: i32, %arg1: i32) -> (i32, i32, i32) {
    %c0_i32 = arith.constant 0 : i32
    %c0_i32_0 = arith.constant 0 : i32
    return %arg0, %arg1, %c0_i32 : i32, i32, i32
  }
}

</mosaic_0001>

<llo_original>
// kernel: tpu_custom_call.1
$region0: #{tpu_custom_call.1}
  #allocation0 [shape = 'u32[]', space=smem, size = 0x4, offset = 0x4, fixed_abs, tag = 'smem constant byte address 0x4 - core index']
  #allocation1 [shape = 'u32[144,128]{1,0:T(1,128)}', space=vmem, size = 0x12000, scoped, tag = 'internal scratch']
  %s0 = inlined_call_operand.vmem [shape: f32[2,8,1], index: 0, kind: input, shape index: {}]
  %s1 = inlined_call_operand.vmem [shape: f32[2,8,1], index: 1, kind: input, shape index: {}]
  %s2 = inlined_call_operand.vmem [shape: f32[2,8,128], index: 2, kind: input, shape index: {}]
  %s3 = inlined_call_operand.hbm [shape: f32[2,8,128], index: 3, kind: output, shape index: {}]
  %s4 = sld [smem:[#allocation0]]
  $region45: #{tpu_custom_call.1} parent=0
    _
  %s6 = ssub.s32 1, %s4
  %s7 = scalar_select 0, %s6, %s4
  $region1: #{tpu_custom_call.1} parent=0
    #allocation2 [shape = 'u8[8192]{0}', space=vmem, size = 0x2000, scoped, tag = 'output window, operand 0']
    #allocation3 [shape = 's32[2]{0}', space=sflag, size = 0x8, scoped, tag = 'scoped memory for tpu_custom_call.1']
    %8 = vsyncpa [#allocation3], 0
    %s9 = scalar_lea.sflag [#allocation3], 1
    %10 = vsyncpa %s9, 0
    loop: start=0, step=1, limit=4
    $region2: #{tpu_custom_call.1} parent=1 // loop_pre_header
      _
    $region3: #{tpu_custom_call.1} parent=1 // loop_header
      %s12 = sphi 0, %s16
      %p13 = scmp.ge.s32.totalorder %s12, 4
      %s19 = sphi 0, %s31
      %s20 = sphi 0, %s27
      %s21 = sphi 0, %s19
      %s22 = sphi 0, %s20
      %s23 = sphi 0, %s21
      %s24 = sphi 0, %s22
      %s36 = sphi 0, %s38
      %s39 = sphi 0, %s36
      %s40 = sphi 0, %s39
      %s56 = sphi 0, %s40
      %s64 = sphi 0, %s66
      %s67 = sphi 0, %s64
      %s68 = sphi 0, %s67
      %s84 = sphi 0, %s68
      %s92 = sphi 0, %s94
      %s95 = sphi 0, %s92
      %s96 = sphi 0, %s95
      %s112 = sphi 0, %s96
      %s120 = sphi 0, %s122
      %s123 = sphi 0, %s120
      %s124 = sphi 0, %s123
      %s140 = sphi 0, %s124
    $region4: #{tpu_custom_call.1} parent=1 // loop_header_branch
      %15 = sbr.rel (%p13) target = $region8
    $region5: #{tpu_custom_call.1} parent=1 // loop_body
      %s17 = ssub.s32 %s12, 1
      %s18 = ssub.s32 %s12, 2
      %s25 = sadd.s32 1, %s20
      %p26 = scmp.ge.s32.totalorder %s25, 1
      %s27 = scalar_select %p26, 0, %s25
      %s28 = sadd.s32 1, %s19
      %s29 = scalar_select %p26, %s28, %s19
      %p30 = scmp.ge.s32.totalorder %s29, 2
      %s31 = scalar_select %p30, 0, %s29
      %s32 = ssub.s32 %s19, %s31
      %s33 = ssub.s32 %s20, %s27
      %s34 = sor.u32 %s32, %s33
      %p35 = scmp.eq.s32.totalorder %s34, 0
      %s37 = sadd.s32 %s36, 1
      %s38 = scalar_select %p35, %s36, %s37
      %p41 = pneg %p35
      %p42 = scmp.eq.s32.totalorder %s12, 1
      %p43 = por %p41, %p42
      %p44 = scmp.ne.s32.totalorder %s36, %s39
      %p45 = scmp.eq.s32.totalorder %s12, 0
      %p46 = por %p44, %p45
      %p47 = scmp.ne.s32.totalorder %s36, %s39
      %p48 = scmp.eq.s32.totalorder %s17, 1
      %p49 = por %p47, %p48
      %p50 = scmp.ne.s32.totalorder %s39, %s40
      %p51 = scmp.eq.s32.totalorder %s17, 0
      %p52 = por %p50, %p51
      %p53 = scmp.ne.s32.totalorder %s39, %s40
      %p54 = scmp.eq.s32.totalorder %s18, 1
      %p55 = por %p53, %p54
      %p57 = scmp.ne.s32.totalorder %s40, %s56
      %p58 = scmp.eq.s32.totalorder %s18, 0
      %p59 = por %p57, %p58
      %s60 = ssub.s32 %s19, %s31
      %s61 = ssub.s32 %s20, %s27
      %s62 = sor.u32 %s60, %s61
      %p63 = scmp.eq.s32.totalorder %s62, 0
      %s65 = sadd.s32 %s64, 1
      %s66 = scalar_select %p63, %s64, %s65
      %p69 = pneg %p63
      %p70 = scmp.eq.s32.totalorder %s12, 1
      %p71 = por %p69, %p70
      %p72 = scmp.ne.s32.totalorder %s64, %s67
      %p73 = scmp.eq.s32.totalorder %s12, 0
      %p74 = por %p72, %p73
      %p75 = scmp.ne.s32.totalorder %s64, %s67
      %p76 = scmp.eq.s32.totalorder %s17, 1
      %p77 = por %p75, %p76
      %p78 = scmp.ne.s32.totalorder %s67, %s68
      %p79 = scmp.eq.s32.totalorder %s17, 0
      %p80 = por %p78, %p79
      %p81 = scmp.ne.s32.totalorder %s67, %s68
      %p82 = scmp.eq.s32.totalorder %s18, 1
      %p83 = por %p81, %p82
      %p85 = scmp.ne.s32.totalorder %s68, %s84
      %p86 = scmp.eq.s32.totalorder %s18, 0
      %p87 = por %p85, %p86
      %s88 = ssub.s32 %s19, %s31
      %s89 = ssub.s32 %s20, %s27
      %s90 = sor.u32 %s88, %s89
      %p91 = scmp.eq.s32.totalorder %s90, 0
      %s93 = sadd.s32 %s92, 1
      %s94 = scalar_select %p91, %s92, %s93
      %p97 = pneg %p91
      %p98 = scmp.eq.s32.totalorder %s12, 1
      %p99 = por %p97, %p98
      %p100 = scmp.ne.s32.totalorder %s92, %s95
      %p101 = scmp.eq.s32.totalorder %s12, 0
      %p102 = por %p100, %p101
      %p103 = scmp.ne.s32.totalorder %s92, %s95
      %p104 = scmp.eq.s32.totalorder %s17, 1
      %p105 = por %p103, %p104
      %p106 = scmp.ne.s32.totalorder %s95, %s96
      %p107 = scmp.eq.s32.totalorder %s17, 0
      %p108 = por %p106, %p107
      %p109 = scmp.ne.s32.totalorder %s95, %s96
      %p110 = scmp.eq.s32.totalorder %s18, 1
      %p111 = por %p109, %p110
      %p113 = scmp.ne.s32.totalorder %s96, %s112
      %p114 = scmp.eq.s32.totalorder %s18, 0
      %p115 = por %p113, %p114
      %s116 = ssub.s32 %s19, %s31
      %s117 = ssub.s32 %s20, %s27
      %s118 = sor.u32 %s116, %s117
      %p119 = scmp.eq.s32.totalorder %s118, 0
      %s121 = sadd.s32 %s120, 1
      %s122 = scalar_select %p119, %s120, %s121
      %p125 = pneg %p119
      %p126 = scmp.eq.s32.totalorder %s12, 1
      %p127 = por %p125, %p126
      %p128 = scmp.ne.s32.totalorder %s120, %s123
      %p129 = scmp.eq.s32.totalorder %s12, 0
      %p130 = por %p128, %p129
      %p131 = scmp.ne.s32.totalorder %s120, %s123
      %p132 = scmp.eq.s32.totalorder %s17, 1
      %p133 = por %p131, %p132
      %p134 = scmp.ne.s32.totalorder %s123, %s124
      %p135 = scmp.eq.s32.totalorder %s17, 0
      %p136 = por %p134, %p135
      %p137 = scmp.ne.s32.totalorder %s123, %s124
      %p138 = scmp.eq.s32.totalorder %s18, 1
      %p139 = por %p137, %p138
      %p141 = scmp.ne.s32.totalorder %s124, %s140
      %p142 = scmp.eq.s32.totalorder %s18, 0
      %p143 = por %p141, %p142
      %p144 = scmp.le.s32.totalorder 1, %s12
      %p145 = scmp.lt.s32.totalorder %s12, 3
      %p146 = pnand %p144, %p145
      %p147 = pneg %p146
      // Predicated region
      $region9: #{tpu_custom_call.1} parent=5 // pred_check
        _
      $region10: #{tpu_custom_call.1} parent=5 // pred_check_branch
        %149 = sbr.rel (%p146) target = $region12
      $region11: #{tpu_custom_call.1} parent=5 // pred_region
        %s150 = ssub.s32 %s12, 1
      $region12: #{tpu_custom_call.1} parent=5 // pred_fallthru
        _
      %p151 = scmp.lt.s32.totalorder %s12, 2
      // Predicated region
      $region13: #{tpu_custom_call.1} parent=5 // pred_check
        %p152 = pneg %p151
      $region14: #{tpu_custom_call.1} parent=5 // pred_check_branch
        %154 = sbr.rel (%p152) target = $region16
      $region15: #{tpu_custom_call.1} parent=5 // pred_region
        // Predicated region
        $region17: #{tpu_custom_call.1} parent=15 // pred_check
          %p155 = pneg %p46
        $region18: #{tpu_custom_call.1} parent=15 // pred_check_branch
          %157 = sbr.rel (%p155) target = $region20
        $region19: #{tpu_custom_call.1} parent=15 // pred_region
          %p158 = scmp.lt.s32.totalorder %s19, 1
          %s159 = scalar_select %p158, %s19, 1
          %p160 = scmp.lt.s32.totalorder %s20, 0
          %s161 = scalar_select %p160, %s20, 0
          %s162 = sadd.s32 %s161, %s159
          %s163 = smul.addr %s162, 8
          %s164 = scalar_lea.vmem %s0, %s163
        $region20: #{tpu_custom_call.1} parent=15 // pred_fallthru
          _
        // Predicated region
        $region21: #{tpu_custom_call.1} parent=15 // pred_check
          %p165 = pneg %p74
        $region22: #{tpu_custom_call.1} parent=15 // pred_check_branch
          %167 = sbr.rel (%p165) target = $region24
        $region23: #{tpu_custom_call.1} parent=15 // pred_region
          %p168 = scmp.lt.s32.totalorder %s19, 1
          %s169 = scalar_select %p168, %s19, 1
          %p170 = scmp.lt.s32.totalorder %s20, 0
          %s171 = scalar_select %p170, %s20, 0
          %s172 = sadd.s32 %s171, %s169
          %s173 = smul.addr %s172, 8
          %s174 = scalar_lea.vmem %s1, %s173
        $region24: #{tpu_custom_call.1} parent=15 // pred_fallthru
          _
        // Predicated region
        $region25: #{tpu_custom_call.1} parent=15 // pred_check
          %p175 = pneg %p102
        $region26: #{tpu_custom_call.1} parent=15 // pred_check_branch
          %177 = sbr.rel (%p175) target = $region28
        $region27: #{tpu_custom_call.1} parent=15 // pred_region
          %p178 = scmp.lt.s32.totalorder %s19, 1
          %s179 = scalar_select %p178, %s19, 1
          %p180 = scmp.lt.s32.totalorder %s20, 0
          %s181 = scalar_select %p180, %s20, 0
          %s182 = sadd.s32 %s181, %s179
          %s183 = smul.addr %s182, 8
          %s184 = scalar_lea.vmem %s2, %s183
        $region28: #{tpu_custom_call.1} parent=15 // pred_fallthru
          _
      $region16: #{tpu_custom_call.1} parent=5 // pred_fallthru
        _
      %p185 = scmp.le.s32.totalorder 1, %s12
      %p186 = scmp.lt.s32.totalorder %s12, 3
      %p187 = pnand %p185, %p186
      %p188 = pneg %p187
      // Predicated region
      $region29: #{tpu_custom_call.1} parent=5 // pred_check
        _
      $region30: #{tpu_custom_call.1} parent=5 // pred_check_branch
        %190 = sbr.rel (%p187) target = $region32
      $region31: #{tpu_custom_call.1} parent=5 // pred_region
        %s191 = ssub.s32 %s12, 1
        %p192 = scmp.lt.s32.totalorder %s21, 1
        %s193 = scalar_select %p192, %s21, 1
        %p194 = scmp.lt.s32.totalorder %s22, 0
        %s195 = scalar_select %p194, %s22, 0
        %s196 = sadd.s32 %s195, %s193
        %s197 = smul.addr %s196, 8
        %s198 = scalar_lea.vmem %s0, %s197
        %p199 = pneg %p52
        %p200 = pneg %p49
        %p201 = scmp.lt.s32.totalorder %s21, 1
        %s202 = scalar_select %p201, %s21, 1
        %p203 = scmp.lt.s32.totalorder %s22, 0
        %s204 = scalar_select %p203, %s22, 0
        %s205 = sadd.s32 %s204, %s202
        %s206 = smul.addr %s205, 8
        %s207 = scalar_lea.vmem %s1, %s206
        %p208 = pneg %p80
        %p209 = pneg %p77
        %p210 = scmp.lt.s32.totalorder %s21, 1
        %s211 = scalar_select %p210, %s21, 1
        %p212 = scmp.lt.s32.totalorder %s22, 0
        %s213 = scalar_select %p212, %s22, 0
        %s214 = sadd.s32 %s213, %s211
        %s215 = smul.addr %s214, 8
        %s216 = scalar_lea.vmem %s2, %s215
        %p217 = pneg %p108
        %p218 = pneg %p105
        %p219 = pneg %p136
        %p220 = pneg %p133
        %s221 = sand.u32 %s123, 1
        %s222 = scalar_lea.sflag [#allocation3], %s221
        %s223 = sand.u32 %s123, 1
        %s224 = smul.addr %s223, 8
        %s225 = scalar_lea.vmem [#allocation2], %s224
        %p226 = scmp.lt.s32.totalorder %s21, 1
        %s227 = scalar_select %p226, %s21, 1
        %p228 = scmp.lt.s32.totalorder %s22, 0
        %s229 = scalar_select %p228, %s22, 0
        %s230 = sadd.s32 %s229, %s227
        %s231 = smul.addr %s230, 8
        %s232 = scalar_lea.vmem %s0, %s231
        %p233 = scmp.lt.s32.totalorder %s21, 1
        %s234 = scalar_select %p233, %s21, 1
        %p235 = scmp.lt.s32.totalorder %s22, 0
        %s236 = scalar_select %p235, %s22, 0
        %s237 = sadd.s32 %s236, %s234
        %s238 = smul.addr %s237, 8
        %s239 = scalar_lea.vmem %s1, %s238
        %p240 = scmp.lt.s32.totalorder %s21, 1
        %s241 = scalar_select %p240, %s21, 1
        %p242 = scmp.lt.s32.totalorder %s22, 0
        %s243 = scalar_select %p242, %s22, 0
        %s244 = sadd.s32 %s243, %s241
        %s245 = smul.addr %s244, 8
        %s246 = scalar_lea.vmem %s2, %s245
        %v247 = vld [vmem:[%s246] sm:$0xff]
        %248 = vadd.xlane.f32.xlu0 %v247
        %v249 = vpop.xlane.xlu0 %248
        %v250 = vmul.f32 %v247, %v247
        %251 = vadd.xlane.f32.xlu0 %v250
        %v252 = vpop.xlane.xlu0 %251
        %v253 = vmul.f32 %v249, 0.03125
        %v254 = vmul.f32 %v252, 0.03125
        %v255 = vmul.f32 %v253, %v253
        %v256 = vsub.f32 %v254, %v255
        %v257 = vmax.f32 %v256, 0.0
        %v258 = vadd.f32 %v257, 1e-05
        %v259 = vrsqrt.pop %v258
        %v260 = vld [vmem:[%s232] sm:$0xff]
        %v261 = vadd.f32 %v260, 1.0
        %v262 = vmul.f32 %v261, %v259
        %v263 = vld [vmem:[%s239] sm:$0xff]
        %v264 = vmul.f32 %v262, %v253
        %v265 = vsub.f32 %v263, %v264
        %267 = vset.pattern.permute.xlu0 0
        %268 = vperm.xlu0 %267, %v262
        %v269 = vpop.permute.xlu0 %268
        %v271 = vmul.f32 %v247, %v269
        %273 = vset.pattern.permute.xlu0 0
        %274 = vperm.xlu0 %273, %v265
        %v275 = vpop.permute.xlu0 %274
        %v277 = vadd.f32 %v271, %v275
        %278 = vst [vmem:[%s225] sm:$0xff] %v277
        %s279 = sand.u32 %s123, 1
        %s280 = scalar_lea.sflag [#allocation3], %s279
        %s281 = sand.u32 %s123, 1
        %s282 = smul.addr %s281, 8
        %s283 = scalar_lea.vmem [#allocation2], %s282
        // Predicated region
        $region33: #{tpu_custom_call.1} parent=31 // pred_check
          %p284 = pneg %p133
        $region34: #{tpu_custom_call.1} parent=31 // pred_check_branch
          %286 = sbr.rel (%p284) target = $region36
        $region35: #{tpu_custom_call.1} parent=31 // pred_region
          %s288 = ssub.s32 128, 128
          %289 = vsyncadd %s280, %s288
          %s290 = sadd.s32 %s22, %s21
          %s291 = smul.addr %s290, 128
          %s292 = scalar_lea.hbm %s3, %s291
          %s294 = sshll.u32 %s283, 4
          %s295 = int_to_ptr.vmem [resolvable:$true] %s294
          %297 = dma.vmem_to_hbm [thread:$0]  %s295, 128, %s292, %s280
        $region36: #{tpu_custom_call.1} parent=31 // pred_fallthru
          _
      $region32: #{tpu_custom_call.1} parent=5 // pred_fallthru
        _
      %p298 = scmp.le.s32.totalorder 2, %s12
      // Predicated region
      $region37: #{tpu_custom_call.1} parent=5 // pred_check
        %p299 = pneg %p298
      $region38: #{tpu_custom_call.1} parent=5 // pred_check_branch
        %301 = sbr.rel (%p299) target = $region40
      $region39: #{tpu_custom_call.1} parent=5 // pred_region
        %s302 = ssub.s32 %s12, 2
        // Predicated region
        $region41: #{tpu_custom_call.1} parent=39 // pred_check
          %p303 = pneg %p139
        $region42: #{tpu_custom_call.1} parent=39 // pred_check_branch
          %305 = sbr.rel (%p303) target = $region44
        $region43: #{tpu_custom_call.1} parent=39 // pred_region
          %s306 = sand.u32 %s124, 1
          %s307 = scalar_lea.sflag [#allocation3], %s306
          %s308 = sand.u32 %s124, 1
          %s309 = smul.addr %s308, 8
          %s310 = scalar_lea.vmem [#allocation2], %s309
          %311 = dma.done %s307, 128
        $region44: #{tpu_custom_call.1} parent=39 // pred_fallthru
          _
      $region40: #{tpu_custom_call.1} parent=5 // pred_fallthru
        _
    $region6: #{tpu_custom_call.1} parent=1 // loop_footer
      %s16 = sadd.s32 1, %s12
    $region7: #{tpu_custom_call.1} parent=1 // loop_footer_branch
      %11 = sbr.rel target = $region3
    $region8: #{tpu_custom_call.1} parent=1 // loop_exit
      _
    %312 = vsyncpa [#allocation3], 1
    %s313 = scalar_lea.sflag [#allocation3], 1
    %314 = vsyncpa %s313, 1

</llo_original>
